<compile_context>
chip_gen: v7x
topology: tpu7x:2x2x1
jax: 0.10.0
libtpu: 0.0.40
codegen_flags: <defaults>
</compile_context>

<pallas_src>
import functools

import jax
import jax.numpy as jnp
from jax.experimental import pallas as pl
from jax.experimental.pallas import tpu as pltpu


def _avsl_contrastive_kernel(lab_row_ref, lab_col_ref, sim_ref, out_ref, *,
                             margin, inv_batch):
    """lab_row_ref: (TILE_M, 1) i32, lab_col_ref: (1, B) i32 (resident),
    sim_ref: (1, TILE_M, B) native dtype, out_ref: (1, 1) f32 accumulator."""
    is_first = (pl.program_id(0) == 0) & (pl.program_id(1) == 0)

    @pl.when(is_first)
    def _():
        out_ref[...] = jnp.zeros_like(out_ref)

    sim = sim_ref[0].astype(jnp.float32)              # (TILE_M, B), cast in-kernel
    pos = lab_row_ref[...] == lab_col_ref[...]        # broadcast compare -> (TILE_M, B)
    hinge = jnp.maximum(margin - sim, 0.0)            # relu(margin - S)
    contrib = jnp.where(pos, sim, hinge)              # pos -> S, neg -> hinge
    out_ref[...] += (jnp.sum(contrib) * inv_batch).reshape(1, 1)


def _pick_row_tile(batch, itemsize, budget_bytes=4 << 20):
    """Largest row tile (multiple of 8, dividing B) whose sims block fits budget."""
    if batch * batch * itemsize <= budget_bytes:
        return batch
    max_rows = max(8, budget_bytes // (batch * itemsize))
    tile = batch  # fallback: full rows (only hit for awkward, non-divisible B)
    best = 0
    for cand in range(8, min(batch, max_rows) + 1, 8):
        if batch % cand == 0:
            best = cand
    return best if best else tile


def avsl_contrastive_loss(sims, labels, margin):
    """sims: (n_mats, B, B) stacked [ovr_sim, emb_sim_0, ..., emb_sim_{L-1}],
    labels: (B,) int, margin: python float  ->  scalar f32 total loss."""
    n_mats, B, B2 = sims.shape
    assert B == B2

    itemsize = jnp.dtype(sims.dtype).itemsize
    tile_m = _pick_row_tile(B, itemsize)
    num_row_tiles = B // tile_m

    lab = labels.astype(jnp.int32)
    lab_row = lab.reshape(B, 1)   # row-label slice per tile
    lab_col = lab.reshape(1, B)   # column labels, resident across the grid

    kernel = functools.partial(_avsl_contrastive_kernel,
                               margin=float(margin), inv_batch=1.0 / B)

    bytes_accessed = int(sims.size * itemsize + 2 * B * 4 + 4)
    cost = pl.CostEstimate(flops=int(5 * sims.size), transcendentals=0,
                           bytes_accessed=bytes_accessed)

    # TODO(synk): for very large production B, add a column-tile grid axis and
    # per-tile partial-sum outputs so v7x's two TensorCores can split the tiles.
    out = pl.pallas_call(
        kernel,
        out_shape=jax.ShapeDtypeStruct((1, 1), jnp.float32),
        grid=(n_mats, num_row_tiles),
        in_specs=[
            pl.BlockSpec((tile_m, 1), lambda m, r: (r, 0)),      # row labels
            pl.BlockSpec((1, B), lambda m, r: (0, 0)),           # col labels (resident)
            pl.BlockSpec((1, tile_m, B), lambda m, r: (m, r, 0)),  # sims, native layout
        ],
        out_specs=pl.BlockSpec((1, 1), lambda m, r: (0, 0)),     # resident accumulator
        compiler_params=pltpu.CompilerParams(
            dimension_semantics=("arbitrary", "arbitrary")),
        cost_estimate=cost,
    )(lab_row, lab_col, sims)
    return out[0, 0]


# ------------- pure-JAX reference (mirrors the PyTorch module) -------------
def _ref_contrastive(sim, labels, margin):
    pos = labels[:, None] == labels[None, :]
    pos_loss = jnp.sum(jnp.where(pos, sim, 0.0))
    neg_loss = jnp.sum(jnp.where(pos, 0.0, jnp.maximum(margin - sim, 0.0)))
    return (pos_loss + neg_loss) / sim.shape[0]


def _ref_avsl(sims, labels, margin):
    return sum(_ref_contrastive(sims[i], labels, margin)
               for i in range(sims.shape[0]))


if __name__ == "__main__":
    key = jax.random.PRNGKey(0)
    k1, k2, k3 = jax.random.split(key, 3)

    # Module hyper-parameters (deterministic, in-script)
    n_layers = 3
    margin = 0.5

    # Small shapes implied by the forward: similarity matrices are (batch, batch)
    B = 8
    n_mats = n_layers + 1

    ovr_sim = jax.random.uniform(k1, (B, B), jnp.float32, -1.0, 1.0)
    emb_sims = jax.random.uniform(k2, (n_layers, B, B), jnp.float32, -1.0, 1.0)
    labels = jax.random.randint(k3, (B,), 0, 4).astype(jnp.int32)

    sims = jnp.concatenate([ovr_sim[None], emb_sims], axis=0)   # (n_mats, B, B)

    loss = avsl_contrastive_loss(sims, labels, margin)
    loss = jax.block_until_ready(loss)

    ref = jax.block_until_ready(_ref_avsl(sims, labels, margin))

    assert abs(float(loss) - float(ref)) <= 1e-3 * max(1.0, abs(float(ref))), \
        f"mismatch: kernel={float(loss)} ref={float(ref)}"
    print("KERNEL_OK")
</pallas_src>

<mosaic_0001>
module attributes {stable_mosaic.version = 11 : i64} {
  func.func @_avsl_contrastive_kernel(%arg0: i32, %arg1: i32, %arg2: memref<8x1xi32, #tpu.memory_space<vmem>>, %arg3: memref<1x8xi32, #tpu.memory_space<vmem>>, %arg4: memref<1x8x8xf32, #tpu.memory_space<vmem>>, %arg5: memref<1x1xf32, #tpu.memory_space<vmem>>) attributes {dimension_semantics = [#tpu.dimension_semantics<arbitrary>, #tpu.dimension_semantics<arbitrary>], iteration_bounds = array<i64: 4, 1>, scalar_prefetch = 0 : i64, scratch_operands = 0 : i64, tpu.core_type = #tpu.core_type<tc>, window_params = [{transform_indices = @transform_0, window_bounds = array<i64: 8, 1>}, {pipeline_mode = #tpu.pipeline_mode<synchronous>, transform_indices = @transform_1, window_bounds = array<i64: 1, 8>}, {transform_indices = @transform_2, window_bounds = array<i64: 1, 8, 8>}, {pipeline_mode = #tpu.pipeline_mode<synchronous>, transform_indices = @transform_3, window_bounds = array<i64: 1, 1>}]} {
    %c0_i32 = arith.constant 0 : i32
    %0 = arith.cmpi eq, %arg0, %c0_i32 : i32
    %c0_i32_0 = arith.constant 0 : i32
    %1 = arith.cmpi eq, %arg1, %c0_i32_0 : i32
    %2 = arith.andi %0, %1 : i1
    %3 = arith.extui %2 : i1 to i32
    %c0_i32_1 = arith.constant 0 : i32
    %4 = arith.cmpi ne, %3, %c0_i32_1 : i32
    scf.if %4 {
      %cst_15 = arith.constant 0.000000e+00 : f32
      %26 = vector.broadcast %cst_15 : f32 to vector<1x1xf32>
      %c0_16 = arith.constant 0 : index
      %c0_17 = arith.constant 0 : index
      %27 = vector.load %arg5[%c0_16, %c0_17] : memref<1x1xf32, #tpu.memory_space<vmem>>, vector<1x1xf32>
      tpu.vector_store %arg5[%c0_16, %c0_17], %26 {strides = array<i32>} : memref<1x1xf32, #tpu.memory_space<vmem>>, vector<1x1xf32>,
    } else {
    }
    %c0 = arith.constant 0 : index
    %c0_2 = arith.constant 0 : index
    %c0_3 = arith.constant 0 : index
    %5 = vector.load %arg4[%c0, %c0_2, %c0_3] : memref<1x8x8xf32, #tpu.memory_space<vmem>>, vector<1x8x8xf32>
    %6 = vector.shape_cast %5 : vector<1x8x8xf32> to vector<8x8xf32>
    %c0_4 = arith.constant 0 : index
    %c0_5 = arith.constant 0 : index
    %7 = vector.load %arg2[%c0_4, %c0_5] : memref<8x1xi32, #tpu.memory_space<vmem>>, vector<8x1xi32>
    %c0_6 = arith.constant 0 : index
    %c0_7 = arith.constant 0 : index
    %8 = vector.load %arg3[%c0_6, %c0_7] : memref<1x8xi32, #tpu.memory_space<vmem>>, vector<1x8xi32>
    %9 = vector.broadcast %7 : vector<8x1xi32> to vector<8x8xi32>
    %10 = vector.broadcast %8 : vector<1x8xi32> to vector<8x8xi32>
    %11 = arith.cmpi eq, %9, %10 : vector<8x8xi32>
    %cst = arith.constant 5.000000e-01 : f32
    %12 = vector.broadcast %cst : f32 to vector<8x8xf32>
    %13 = arith.subf %12, %6 : vector<8x8xf32>
    %cst_8 = arith.constant 0.000000e+00 : f32
    %14 = vector.broadcast %cst_8 : f32 to vector<8x8xf32>
    %15 = arith.maximumf %13, %14 : vector<8x8xf32>
    %16 = arith.select %11, %6, %15 : vector<8x8xi1>, vector<8x8xf32>
    %c0_9 = arith.constant 0 : index
    %c0_10 = arith.constant 0 : index
    %17 = vector.load %arg5[%c0_9, %c0_10] : memref<1x1xf32, #tpu.memory_space<vmem>>, vector<1x1xf32>
    %18 = vector.shape_cast %16 : vector<8x8xf32> to vector<1x8x8xf32>
    %cst_11 = arith.constant dense<0.000000e+00> : vector<1xf32>
    %19 = vector.multi_reduction <add>, %18, %cst_11 [1, 2] : vector<1x8x8xf32> to vector<1xf32>
    %20 = vector.shape_cast %19 : vector<1xf32> to vector<1x1x1xf32>
    %21 = vector.extract %20[0, 0, 0] : f32 from vector<1x1x1xf32>
    %cst_12 = arith.constant 1.250000e-01 : f32
    %22 = arith.mulf %21, %cst_12 : f32
    %23 = vector.broadcast %22 : f32 to vector<1x1xf32>
    %24 = arith.addf %17, %23 : vector<1x1xf32>
    %c0_13 = arith.constant 0 : index
    %c0_14 = arith.constant 0 : index
    %25 = vector.load %arg5[%c0_13, %c0_14] : memref<1x1xf32, #tpu.memory_space<vmem>>, vector<1x1xf32>
    tpu.vector_store %arg5[%c0_13, %c0_14], %24 {strides = array<i32>} : memref<1x1xf32, #tpu.memory_space<vmem>>, vector<1x1xf32>,
    return
  }
  func.func @transform_0(%arg0: i32, %arg1: i32) -> (i32, i32) {
    %c0_i32 = arith.constant 0 : i32
    %c0_i32_0 = arith.constant 0 : i32
    return %arg1, %c0_i32 : i32, i32
  }
  func.func @transform_1(%arg0: i32, %arg1: i32) -> (i32, i32) {
    %c0_i32 = arith.constant 0 : i32
    %c0_i32_0 = arith.constant 0 : i32
    %c0_i32_1 = arith.constant 0 : i32
    return %c0_i32, %c0_i32_0 : i32, i32
  }
  func.func @transform_2(%arg0: i32, %arg1: i32) -> (i32, i32, i32) {
    %c0_i32 = arith.constant 0 : i32
    %c0_i32_0 = arith.constant 0 : i32
    return %arg0, %arg1, %c0_i32 : i32, i32, i32
  }
  func.func @transform_3(%arg0: i32, %arg1: i32) -> (i32, i32) {
    %c0_i32 = arith.constant 0 : i32
    %c0_i32_0 = arith.constant 0 : i32
    %c0_i32_1 = arith.constant 0 : i32
    return %c0_i32, %c0_i32_0 : i32, i32
  }
}

</mosaic_0001>

<llo_original>
// kernel: tpu_custom_call.1
$region0: #{tpu_custom_call.1}
  #allocation0 [shape = 'u32[]', space=smem, size = 0x4, offset = 0x4, fixed_abs, tag = 'smem constant byte address 0x4 - core index']
  #allocation1 [shape = 'u32[144,128]{1,0:T(1,128)}', space=vmem, size = 0x12000, scoped, tag = 'internal scratch']
  %s0 = inlined_call_operand.vmem [shape: s32[8,1], index: 0, kind: input, shape index: {}]
  %s1 = inlined_call_operand.vmem [shape: s32[1,8], index: 1, kind: input, shape index: {}]
  %s2 = inlined_call_operand.hbm [shape: f32[4,8,8], index: 2, kind: input, shape index: {}]
  %s3 = inlined_call_operand.hbm [shape: f32[1,1], index: 3, kind: output, shape index: {}]
  %s4 = sld [smem:[#allocation0]]
  $region53: #{tpu_custom_call.1} parent=0
    _
  %s6 = ssub.s32 1, %s4
  %s7 = scalar_select 0, %s6, %s4
  $region1: #{tpu_custom_call.1} parent=0
    #allocation2 [shape = 'u8[8192]{0}', space=vmem, size = 0x2000, scoped, tag = 'input window, operand 2']
    #allocation3 [shape = 's32[2]{0}', space=sflag, size = 0x8, scoped, tag = 'scoped memory for tpu_custom_call.1']
    #allocation4 [shape = 's32[2]{0}', space=sflag, size = 0x8, scoped, tag = 'scoped memory for tpu_custom_call.1']
    #allocation5 [shape = 'u8[512]{0}', space=vmem, size = 0x400, scoped, tag = 'output window, operand 0, single buffered']
    %8 = vsyncpa [#allocation3], 0
    %s9 = scalar_lea.sflag [#allocation3], 1
    %10 = vsyncpa %s9, 0
    %11 = vsyncpa [#allocation4], 0
    loop: start=0, step=1, limit=6
    $region2: #{tpu_custom_call.1} parent=1 // loop_pre_header
      _
    $region3: #{tpu_custom_call.1} parent=1 // loop_header
      %s13 = sphi 0, %s17
      %p14 = scmp.ge.s32.totalorder %s13, 6
      %s20 = sphi 0, %s32
      %s21 = sphi 0, %s28
      %s22 = sphi 0, %s20
      %s23 = sphi 0, %s21
      %s24 = sphi 0, %s22
      %s25 = sphi 0, %s23
      %s35 = sphi 0, %s37
      %s38 = sphi 0, %s35
      %s39 = sphi 0, %s38
      %s55 = sphi 0, %s39
      %s59 = sphi 0, %s59
      %s61 = sphi 0, %s59
      %s62 = sphi 0, %s61
      %s76 = sphi 0, %s62
      %s84 = sphi 0, %s86
      %s87 = sphi 0, %s84
      %s88 = sphi 0, %s87
      %s104 = sphi 0, %s88
      %s108 = sphi 0, %s108
      %s110 = sphi 0, %s108
      %s111 = sphi 0, %s110
      %s125 = sphi 0, %s111
    $region4: #{tpu_custom_call.1} parent=1 // loop_header_branch
      %16 = sbr.rel (%p14) target = $region8
    $region5: #{tpu_custom_call.1} parent=1 // loop_body
      %s18 = ssub.s32 %s13, 1
      %s19 = ssub.s32 %s13, 2
      %s26 = sadd.s32 1, %s21
      %p27 = scmp.ge.s32.totalorder %s26, 1
      %s28 = scalar_select %p27, 0, %s26
      %s29 = sadd.s32 1, %s20
      %s30 = scalar_select %p27, %s29, %s20
      %p31 = scmp.ge.s32.totalorder %s30, 4
      %s32 = scalar_select %p31, 0, %s30
      %s33 = ssub.s32 %s21, %s28
      %p34 = scmp.eq.s32.totalorder %s33, 0
      %s36 = sadd.s32 %s35, 1
      %s37 = scalar_select %p34, %s35, %s36
      %p40 = pneg %p34
      %p41 = scmp.eq.s32.totalorder %s13, 3
      %p42 = por %p40, %p41
      %p43 = scmp.ne.s32.totalorder %s35, %s38
      %p44 = scmp.eq.s32.totalorder %s13, 0
      %p45 = por %p43, %p44
      %p46 = scmp.ne.s32.totalorder %s35, %s38
      %p47 = scmp.eq.s32.totalorder %s18, 3
      %p48 = por %p46, %p47
      %p49 = scmp.ne.s32.totalorder %s38, %s39
      %p50 = scmp.eq.s32.totalorder %s18, 0
      %p51 = por %p49, %p50
      %p52 = scmp.ne.s32.totalorder %s38, %s39
      %p53 = scmp.eq.s32.totalorder %s19, 3
      %p54 = por %p52, %p53
      %p56 = scmp.ne.s32.totalorder %s39, %s55
      %p57 = scmp.eq.s32.totalorder %s19, 0
      %p58 = por %p56, %p57
      %s60 = sadd.s32 %s59, 1
      %p63 = scmp.eq.s32.totalorder %s13, 3
      %p64 = scmp.ne.s32.totalorder %s59, %s61
      %p65 = scmp.eq.s32.totalorder %s13, 0
      %p66 = por %p64, %p65
      %p67 = scmp.ne.s32.totalorder %s59, %s61
      %p68 = scmp.eq.s32.totalorder %s18, 3
      %p69 = por %p67, %p68
      %p70 = scmp.ne.s32.totalorder %s61, %s62
      %p71 = scmp.eq.s32.totalorder %s18, 0
      %p72 = por %p70, %p71
      %p73 = scmp.ne.s32.totalorder %s61, %s62
      %p74 = scmp.eq.s32.totalorder %s19, 3
      %p75 = por %p73, %p74
      %p77 = scmp.ne.s32.totalorder %s62, %s76
      %p78 = scmp.eq.s32.totalorder %s19, 0
      %p79 = por %p77, %p78
      %s80 = ssub.s32 %s20, %s32
      %s81 = ssub.s32 %s21, %s28
      %s82 = sor.u32 %s80, %s81
      %p83 = scmp.eq.s32.totalorder %s82, 0
      %s85 = sadd.s32 %s84, 1
      %s86 = scalar_select %p83, %s84, %s85
      %p89 = pneg %p83
      %p90 = scmp.eq.s32.totalorder %s13, 3
      %p91 = por %p89, %p90
      %p92 = scmp.ne.s32.totalorder %s84, %s87
      %p93 = scmp.eq.s32.totalorder %s13, 0
      %p94 = por %p92, %p93
      %p95 = scmp.ne.s32.totalorder %s84, %s87
      %p96 = scmp.eq.s32.totalorder %s18, 3
      %p97 = por %p95, %p96
      %p98 = scmp.ne.s32.totalorder %s87, %s88
      %p99 = scmp.eq.s32.totalorder %s18, 0
      %p100 = por %p98, %p99
      %p101 = scmp.ne.s32.totalorder %s87, %s88
      %p102 = scmp.eq.s32.totalorder %s19, 3
      %p103 = por %p101, %p102
      %p105 = scmp.ne.s32.totalorder %s88, %s104
      %p106 = scmp.eq.s32.totalorder %s19, 0
      %p107 = por %p105, %p106
      %s109 = sadd.s32 %s108, 1
      %p112 = scmp.eq.s32.totalorder %s13, 3
      %p113 = scmp.ne.s32.totalorder %s108, %s110
      %p114 = scmp.eq.s32.totalorder %s13, 0
      %p115 = por %p113, %p114
      %p116 = scmp.ne.s32.totalorder %s108, %s110
      %p117 = scmp.eq.s32.totalorder %s18, 3
      %p118 = por %p116, %p117
      %p119 = scmp.ne.s32.totalorder %s110, %s111
      %p120 = scmp.eq.s32.totalorder %s18, 0
      %p121 = por %p119, %p120
      %p122 = scmp.ne.s32.totalorder %s110, %s111
      %p123 = scmp.eq.s32.totalorder %s19, 3
      %p124 = por %p122, %p123
      %p126 = scmp.ne.s32.totalorder %s111, %s125
      %p127 = scmp.eq.s32.totalorder %s19, 0
      %p128 = por %p126, %p127
      %p129 = scmp.le.s32.totalorder 1, %s13
      %p130 = scmp.lt.s32.totalorder %s13, 5
      %p131 = pnand %p129, %p130
      %p132 = pneg %p131
      // Predicated region
      $region9: #{tpu_custom_call.1} parent=5 // pred_check
        _
      $region10: #{tpu_custom_call.1} parent=5 // pred_check_branch
        %134 = sbr.rel (%p131) target = $region12
      $region11: #{tpu_custom_call.1} parent=5 // pred_region
        %s135 = ssub.s32 %s13, 1
        // Predicated region
        $region13: #{tpu_custom_call.1} parent=11 // pred_check
          %p136 = pneg %p51
        $region14: #{tpu_custom_call.1} parent=11 // pred_check_branch
          %138 = sbr.rel (%p136) target = $region16
        $region15: #{tpu_custom_call.1} parent=11 // pred_region
          %p139 = scmp.lt.s32.totalorder %s23, 0
          %s140 = scalar_select %p139, %s23, 0
          %s141 = smul.addr %s140, 8
          %s142 = scalar_lea.vmem %s0, %s141
        $region16: #{tpu_custom_call.1} parent=11 // pred_fallthru
          _
        // Predicated region
        $region17: #{tpu_custom_call.1} parent=11 // pred_check
          %p143 = pneg %p72
        $region18: #{tpu_custom_call.1} parent=11 // pred_check_branch
          %145 = sbr.rel (%p143) target = $region20
        $region19: #{tpu_custom_call.1} parent=11 // pred_region
          _
        $region20: #{tpu_custom_call.1} parent=11 // pred_fallthru
          _
      $region12: #{tpu_custom_call.1} parent=5 // pred_fallthru
        _
      %p146 = scmp.lt.s32.totalorder %s13, 4
      // Predicated region
      $region21: #{tpu_custom_call.1} parent=5 // pred_check
        %p147 = pneg %p146
      $region22: #{tpu_custom_call.1} parent=5 // pred_check_branch
        %149 = sbr.rel (%p147) target = $region24
      $region23: #{tpu_custom_call.1} parent=5 // pred_region
        // Predicated region
        $region25: #{tpu_custom_call.1} parent=23 // pred_check
          %p150 = pneg %p94
        $region26: #{tpu_custom_call.1} parent=23 // pred_check_branch
          %152 = sbr.rel (%p150) target = $region28
        $region27: #{tpu_custom_call.1} parent=23 // pred_region
          %s153 = sand.u32 %s84, 1
          %s154 = scalar_lea.sflag [#allocation3], %s153
          %s155 = sand.u32 %s84, 1
          %s156 = smul.addr %s155, 8
          %s157 = scalar_lea.vmem [#allocation2], %s156
          %s159 = ssub.s32 128, 128
          %160 = vsyncadd %s154, %s159
          %s161 = sadd.s32 %s21, %s20
          %s162 = smul.addr %s161, 128
          %s163 = scalar_lea.hbm %s2, %s162
          %s165 = sshll.u32 %s157, 4
          %s166 = int_to_ptr.vmem [resolvable:$true] %s165
          %168 = dma.hbm_to_vmem [thread:$0]  %s163, 128, %s166, %s154
        $region28: #{tpu_custom_call.1} parent=23 // pred_fallthru
          _
      $region24: #{tpu_custom_call.1} parent=5 // pred_fallthru
        _
      %p169 = scmp.le.s32.totalorder 1, %s13
      %p170 = scmp.lt.s32.totalorder %s13, 5
      %p171 = pnand %p169, %p170
      %p172 = pneg %p171
      // Predicated region
      $region29: #{tpu_custom_call.1} parent=5 // pred_check
        _
      $region30: #{tpu_custom_call.1} parent=5 // pred_check_branch
        %174 = sbr.rel (%p171) target = $region32
      $region31: #{tpu_custom_call.1} parent=5 // pred_region
        %s175 = ssub.s32 %s13, 1
        %s176 = sand.u32 %s87, 1
        %s177 = scalar_lea.sflag [#allocation3], %s176
        %s178 = sand.u32 %s87, 1
        %s179 = smul.addr %s178, 8
        %s180 = scalar_lea.vmem [#allocation2], %s179
        // Predicated region
        $region33: #{tpu_custom_call.1} parent=31 // pred_check
          %p181 = pneg %p100
        $region34: #{tpu_custom_call.1} parent=31 // pred_check_branch
          %183 = sbr.rel (%p181) target = $region36
        $region35: #{tpu_custom_call.1} parent=31 // pred_region
          %184 = dma.done %s177, 128
        $region36: #{tpu_custom_call.1} parent=31 // pred_fallthru
          _
        %p185 = scmp.lt.s32.totalorder %s23, 0
        %s186 = scalar_select %p185, %s23, 0
        %s187 = smul.addr %s186, 8
        %s188 = scalar_lea.vmem %s0, %s187
        %p189 = pneg %p51
        %p190 = pneg %p48
        %p191 = pneg %p72
        %p192 = pneg %p69
        %s193 = sand.u32 %s87, 1
        %s194 = scalar_lea.sflag [#allocation3], %s193
        %s195 = sand.u32 %s87, 1
        %s196 = smul.addr %s195, 8
        %s197 = scalar_lea.vmem [#allocation2], %s196
        %p198 = pneg %p100
        %p199 = pneg %p97
        %p200 = pneg %p121
        %p201 = pneg %p118
        %p202 = scmp.lt.s32.totalorder %s23, 0
        %s203 = scalar_select %p202, %s23, 0
        %s204 = smul.addr %s203, 8
        %s205 = scalar_lea.vmem %s0, %s204
        %p206 = scmp.eq.s32.totalorder %s22, 0
        %p207 = scmp.eq.s32.totalorder %s23, 0
        %p208 = pnand %p206, %p207
        %p209 = pneg %p208
        // Predicated region
        $region37: #{tpu_custom_call.1} parent=31 // pred_check
          _
        $region38: #{tpu_custom_call.1} parent=31 // pred_check_branch
          %211 = sbr.rel (%p208) target = $region40
        $region39: #{tpu_custom_call.1} parent=31 // pred_region
          %vm212 = vcmask 0
          %213 = vst.msk [vmem:[#allocation5] sm:$0x1] %vm212, 0.0
        $region40: #{tpu_custom_call.1} parent=31 // pred_fallthru
          _
        %v214 = vld [vmem:[%s180] sm:$0xff]
        %v215 = vld [vmem:[%s205] sm:$0xff]
        %v216 = vld [vmem:[%s1] sm:$0x1]
        %217 = vset.pattern.permute.xlu0 0
        %218 = vperm.xlu0 %217, %v215
        %v219 = vpop.permute.xlu0 %218
        %v220 = vlaneseq
        %v221 = vshrl.u32 %v220, 7
        %v222 = vsub.s32 0, %v221
        %v223 = vrot.slane %v216, %v222
        %vm224 = vcmp.eq.s32.totalorder %v219, %v223
        %v225 = vsub.f32 0.5, %v214
        %v226 = vmax.f32 %v225, 0.0
        %v227 = vsel %vm224, %v214, %v226
        %v228 = vld [vmem:[#allocation5] sm:$0x1]
        %vm229 = vcmask 64512
        %v230 = vsel %vm229, %v227, 0.0
        %231 = vadd.xlane.f32.xlu0 %v230
        %v232 = vpop.xlane.xlu0 %231
        %v233 = vrot.slane %v232, 4
        %v234 = vadd.f32 %v232, %v233
        %v235 = vrot.slane %v234, 2
        %v236 = vadd.f32 %v234, %v235
        %v237 = vrot.slane %v236, 1
        %v238 = vadd.f32 %v236, %v237
        %s239 = vtos %v238
        %s240 = smul.f32 %s239, 0.125
        %v241 = vstv %s240
        %v242 = vadd.f32 %v228, %v241
        %vm243 = vcmask 0
        %244 = vst.msk [vmem:[#allocation5] sm:$0x1] %vm243, %v242
        // Predicated region
        $region41: #{tpu_custom_call.1} parent=31 // pred_check
          %p245 = pneg %p118
        $region42: #{tpu_custom_call.1} parent=31 // pred_check_branch
          %247 = sbr.rel (%p245) target = $region44
        $region43: #{tpu_custom_call.1} parent=31 // pred_region
          %s249 = ssub.s32 16, 16
          %250 = vsyncadd [#allocation4], %s249
          %s252 = sshll.u32 [#allocation5], 4
          %s253 = int_to_ptr.vmem [resolvable:$true] %s252
          %255 = dma.vmem_to_hbm [thread:$0]  %s253, 16, %s3, [#allocation4]
        $region44: #{tpu_custom_call.1} parent=31 // pred_fallthru
          _
        // Predicated region
        $region45: #{tpu_custom_call.1} parent=31 // pred_check
          %p256 = pneg %p118
        $region46: #{tpu_custom_call.1} parent=31 // pred_check_branch
          %258 = sbr.rel (%p256) target = $region48
        $region47: #{tpu_custom_call.1} parent=31 // pred_region
          %259 = dma.done [#allocation4], 16
        $region48: #{tpu_custom_call.1} parent=31 // pred_fallthru
          _
      $region32: #{tpu_custom_call.1} parent=5 // pred_fallthru
        _
      %p260 = scmp.le.s32.totalorder 2, %s13
      // Predicated region
      $region49: #{tpu_custom_call.1} parent=5 // pred_check
        %p261 = pneg %p260
      $region50: #{tpu_custom_call.1} parent=5 // pred_check_branch
        %263 = sbr.rel (%p261) target = $region52
      $region51: #{tpu_custom_call.1} parent=5 // pred_region
        %s264 = ssub.s32 %s13, 2
      $region52: #{tpu_custom_call.1} parent=5 // pred_fallthru
        _
    $region6: #{tpu_custom_call.1} parent=1 // loop_footer
      %s17 = sadd.s32 1, %s13
    $region7: #{tpu_custom_call.1} parent=1 // loop_footer_branch
      %12 = sbr.rel target = $region3
    $region8: #{tpu_custom_call.1} parent=1 // loop_exit
      _
    %265 = vsyncpa [#allocation3], 1
    %s266 = scalar_lea.sflag [#allocation3], 1
    %267 = vsyncpa %s266, 1
    %268 = vsyncpa [#allocation4], 1
    %s269 = scalar_lea.sflag [#allocation4], 1
    %270 = vsyncpa %s269, 1

</llo_original>
